<compile_context>
chip_gen: v7x
topology: tpu7x:2x2x1
jax: 0.10.0
libtpu: 0.0.40
codegen_flags: <defaults>
</compile_context>

<pallas_src>
import functools
import math

import numpy as np
import jax
import jax.numpy as jnp
from jax.experimental import pallas as pl
from jax.experimental.pallas import tpu as pltpu


def _interp_matrix(out_size: int, in_size: int) -> np.ndarray:
    """(out_size, in_size) align_corners=True bilinear interpolation weights (rows=output)."""
    if out_size == 1:
        src = np.zeros((1,), np.float64)
    else:
        src = np.arange(out_size, dtype=np.float64) * (in_size - 1) / (out_size - 1)
    i0 = np.clip(np.floor(src).astype(np.int64), 0, in_size - 1)
    i1 = np.minimum(i0 + 1, in_size - 1)
    w1 = (src - i0).astype(np.float32)
    w0 = (1.0 - w1).astype(np.float32)
    m = np.zeros((out_size, in_size), np.float32)
    np.add.at(m, (np.arange(out_size), i0), w0)
    np.add.at(m, (np.arange(out_size), i1), w1)
    return m


def _bilinear_upsample_kernel(x_ref, wyt_ref, wxt_ref, o_ref, *,
                              cblk, h_in, w_in, h_out, w_out):
    # x_ref:   (CBLK, Hin, Win)   input channel block
    # wyt_ref: (Hin, Hout)        height interpolation weights (transposed)
    # wxt_ref: (Win, Wout)        width interpolation weights (transposed)
    # o_ref:   (CBLK*Hout, Wout)  row-major view of the (CBLK, Hout, Wout) output block
    x = x_ref[...]

    # Height pass: contract Hin.  Move Hin to the lane (last) dim and fold channels+Win into
    # the MXU M dim -> one (CBLK*Win, Hin) @ (Hin, Hout) matmul with f32 accumulation.
    xt = jnp.swapaxes(x, -1, -2).reshape(cblk * w_in, h_in)
    t = jnp.dot(xt, wyt_ref[...], preferred_element_type=jnp.float32)     # (CBLK*Win, Hout)
    t = t.astype(x.dtype)

    # Width pass: contract Win.  Move Win back to the lane dim and fold channels+Hout into
    # the MXU M dim -> one (CBLK*Hout, Win) @ (Win, Wout) matmul.  Result rows are already
    # ordered (channel, Hout), i.e. exactly the NCHW output block layout -> no final transpose.
    t = jnp.swapaxes(t.reshape(cblk, w_in, h_out), -1, -2).reshape(cblk * h_out, w_in)
    out = jnp.dot(t, wxt_ref[...], preferred_element_type=jnp.float32)    # (CBLK*Hout, Wout)

    o_ref[...] = out.astype(o_ref.dtype)


def _choose_cblk(c_x, h_in, w_in, h_out, w_out):
    # MXU fill: aim for >=256 rows in both matmuls (covers v6e/v7x; plenty for v5e).
    cblk = pl.cdiv(256, max(1, min(w_in, h_out)))
    # VMEM budget: keep (x block + intermediates + out block), double-buffered, around ~4 MiB
    # so the pipeline fits every generation's default scoped VMEM (incl. v7x's smaller VMEM).
    # TODO(synk): for very large spatial sizes (cblk==1 still over budget) an extra spatial
    # tiling axis would be needed; typical HarDNet feature maps never hit that.
    bytes_per_chan = 4 * (h_in * w_in + w_in * h_out + h_out * w_in + h_out * w_out)
    cblk = min(cblk, max(1, (4 * 1024 * 1024) // (2 * bytes_per_chan)))
    cblk = max(1, min(cblk, c_x))
    # Rebalance across blocks so a ragged channel count doesn't leave a nearly-empty trailing
    # block of padded MXU rows (e.g. C=40, cblk=32 -> 2 blocks of 20 instead of 32+8).
    n_cb = pl.cdiv(c_x, cblk)
    cblk = pl.cdiv(c_x, n_cb)
    # Keep the output block's sublane dim (CBLK*Hout) a multiple of 8; a block spanning all
    # channels (cblk == c_x) equals the full array dim and is always legal.
    if cblk < c_x and (cblk * h_out) % 8 != 0:
        mult = 8 // math.gcd(h_out, 8)
        cblk = min(c_x, pl.cdiv(cblk, mult) * mult)
    return int(cblk)


def transition_up(x, skip, concat=True):
    """Pallas TransitionUp: bilinear resize of x to skip's spatial size (+ optional concat)."""
    n, c_x, h_in, w_in = (int(d) for d in x.shape)
    h_out, w_out = int(skip.shape[2]), int(skip.shape[3])
    assert int(skip.shape[0]) == n, "batch dims must match"

    cdt = jnp.bfloat16 if x.dtype == jnp.bfloat16 else jnp.float32
    wyt = jnp.asarray(_interp_matrix(h_out, h_in).T, dtype=cdt)   # (Hin, Hout)
    wxt = jnp.asarray(_interp_matrix(w_out, w_in).T, dtype=cdt)   # (Win, Wout)
    x_in = x if x.dtype == cdt else x.astype(cdt)

    cblk = _choose_cblk(c_x, h_in, w_in, h_out, w_out)
    n_cb = pl.cdiv(c_x, cblk)

    kernel = functools.partial(_bilinear_upsample_kernel, cblk=cblk,
                               h_in=h_in, w_in=w_in, h_out=h_out, w_out=w_out)

    up_flat = pl.pallas_call(
        kernel,
        # Flat (N, C*Hout, Wout) view of the NCHW result: the kernel's (CBLK*Hout, Wout)
        # matmul output maps 1:1 onto this block; splitting the dim back is a free reshape.
        out_shape=jax.ShapeDtypeStruct((n, c_x * h_out, w_out), x.dtype),
        grid_spec=pltpu.PrefetchScalarGridSpec(
            num_scalar_prefetch=0,
            grid=(n, n_cb),
            in_specs=[
                pl.BlockSpec((None, cblk, h_in, w_in), lambda nb, cb: (nb, cb, 0, 0)),
                pl.BlockSpec((h_in, h_out), lambda nb, cb: (0, 0)),
                pl.BlockSpec((w_in, w_out), lambda nb, cb: (0, 0)),
            ],
            out_specs=pl.BlockSpec((None, cblk * h_out, w_out), lambda nb, cb: (nb, cb, 0)),
        ),
        compiler_params=pltpu.CompilerParams(
            dimension_semantics=("parallel", "parallel")),
    )(x_in, wyt, wxt)

    up = up_flat.reshape(n, c_x, h_out, w_out)
    if concat:
        # The skip half of the concat is a pure HBM->HBM copy; XLA does it at roofline
        # bandwidth, so it stays out of the Pallas kernel.
        up = jnp.concatenate([up, skip.astype(up.dtype)], axis=1)
    return up


def _ref_transition_up(x, skip, concat=True):
    """Independent numpy reference of F.interpolate(mode='bilinear', align_corners=True) + cat."""
    x = np.asarray(x, np.float32)
    skip = np.asarray(skip, np.float32)
    n, c, hi, wi = x.shape
    ho, wo = skip.shape[2], skip.shape[3]
    out = np.zeros((n, c, ho, wo), np.float32)
    for yo in range(ho):
        sy = 0.0 if ho == 1 else yo * (hi - 1) / (ho - 1)
        y0 = int(np.floor(sy)); y1 = min(y0 + 1, hi - 1)
        wy1 = sy - y0; wy0 = 1.0 - wy1
        for xo in range(wo):
            sx = 0.0 if wo == 1 else xo * (wi - 1) / (wo - 1)
            x0 = int(np.floor(sx)); x1 = min(x0 + 1, wi - 1)
            wx1 = sx - x0; wx0 = 1.0 - wx1
            out[:, :, yo, xo] = (wy0 * wx0 * x[:, :, y0, x0]
                                 + wy0 * wx1 * x[:, :, y0, x1]
                                 + wy1 * wx0 * x[:, :, y1, x0]
                                 + wy1 * wx1 * x[:, :, y1, x1])
    if concat:
        out = np.concatenate([out, skip], axis=1)
    return out


if __name__ == "__main__":
    key = jax.random.PRNGKey(0)
    k1, k2, k3, k4 = jax.random.split(key, 4)

    # Case 1: small shapes consistent with the module (x is lower-resolution than skip).
    x = jax.random.normal(k1, (2, 4, 8, 8), jnp.float32)
    skip = jax.random.normal(k2, (2, 4, 16, 16), jnp.float32)
    out = jax.block_until_ready(transition_up(x, skip, concat=True))
    ref = _ref_transition_up(x, skip, concat=True)
    np.testing.assert_allclose(np.asarray(out), ref, rtol=1e-5, atol=1e-5)
    assert out.shape == (2, 8, 16, 16)

    # Case 2: more channels than one channel-block (exercises the blocked, rebalanced grid)
    # and the concat=False path (skip only contributes its spatial size).
    x2 = jax.random.normal(k3, (1, 40, 8, 8), jnp.float32)
    skip2 = jax.random.normal(k4, (1, 3, 16, 16), jnp.float32)
    out2 = jax.block_until_ready(transition_up(x2, skip2, concat=False))
    ref2 = _ref_transition_up(x2, skip2, concat=False)
    np.testing.assert_allclose(np.asarray(out2), ref2, rtol=1e-5, atol=1e-5)
    assert out2.shape == (1, 40, 16, 16)

    print("KERNEL_OK")
</pallas_src>

<mosaic_0001>
module attributes {stable_mosaic.version = 11 : i64} {
  func.func @_bilinear_upsample_kernel(%arg0: i32, %arg1: i32, %arg2: memref<1x4x8x8xf32, #tpu.memory_space<vmem>>, %arg3: memref<8x16xf32, #tpu.memory_space<vmem>>, %arg4: memref<8x16xf32, #tpu.memory_space<vmem>>, %arg5: memref<1x64x16xf32, #tpu.memory_space<vmem>>) attributes {dimension_semantics = [#tpu.dimension_semantics<parallel>, #tpu.dimension_semantics<parallel>], iteration_bounds = array<i64: 2, 1>, scalar_prefetch = 0 : i64, scratch_operands = 0 : i64, tpu.core_type = #tpu.core_type<tc>, window_params = [{transform_indices = @transform_0, window_bounds = array<i64: 1, 4, 8, 8>}, {pipeline_mode = #tpu.pipeline_mode<synchronous>, transform_indices = @transform_1, window_bounds = array<i64: 8, 16>}, {pipeline_mode = #tpu.pipeline_mode<synchronous>, transform_indices = @transform_2, window_bounds = array<i64: 8, 16>}, {transform_indices = @transform_3, window_bounds = array<i64: 1, 64, 16>}]} {
    %c0 = arith.constant 0 : index
    %c0_0 = arith.constant 0 : index
    %c0_1 = arith.constant 0 : index
    %c0_2 = arith.constant 0 : index
    %0 = vector.load %arg2[%c0, %c0_0, %c0_1, %c0_2] : memref<1x4x8x8xf32, #tpu.memory_space<vmem>>, vector<1x4x8x8xf32>
    %1 = vector.shape_cast %0 : vector<1x4x8x8xf32> to vector<4x8x8xf32>
    %2 = tpu.transpose %1, [0, 2, 1] : vector<4x8x8xf32> -> vector<4x8x8xf32>
    %3 = vector.shape_cast %2 : vector<4x8x8xf32> to vector<32x8xf32>
    %c0_3 = arith.constant 0 : index
    %c0_4 = arith.constant 0 : index
    %4 = vector.load %arg3[%c0_3, %c0_4] : memref<8x16xf32, #tpu.memory_space<vmem>>, vector<8x16xf32>
    %cst = arith.constant dense<0.000000e+00> : vector<32x16xf32>
    %5 = tpu.matmul %3, %4, %cst {dimension_numbers = #tpu.dot_dimension_numbers<[1], [0], [0], [1], [0, 0, 1, 1], [], []>} : vector<32x8xf32>, vector<8x16xf32>, vector<32x16xf32> -> vector<32x16xf32>
    %6 = vector.shape_cast %5 : vector<32x16xf32> to vector<4x8x16xf32>
    %7 = tpu.transpose %6, [0, 2, 1] : vector<4x8x16xf32> -> vector<4x16x8xf32>
    %8 = vector.shape_cast %7 : vector<4x16x8xf32> to vector<64x8xf32>
    %c0_5 = arith.constant 0 : index
    %c0_6 = arith.constant 0 : index
    %9 = vector.load %arg4[%c0_5, %c0_6] : memref<8x16xf32, #tpu.memory_space<vmem>>, vector<8x16xf32>
    %cst_7 = arith.constant dense<0.000000e+00> : vector<64x16xf32>
    %10 = tpu.matmul %8, %9, %cst_7 {dimension_numbers = #tpu.dot_dimension_numbers<[1], [0], [0], [1], [0, 0, 1, 1], [], []>} : vector<64x8xf32>, vector<8x16xf32>, vector<64x16xf32> -> vector<64x16xf32>
    %c0_8 = arith.constant 0 : index
    %c0_9 = arith.constant 0 : index
    %c0_10 = arith.constant 0 : index
    %11 = vector.load %arg5[%c0_8, %c0_9, %c0_10] : memref<1x64x16xf32, #tpu.memory_space<vmem>>, vector<1x64x16xf32>
    %12 = vector.shape_cast %11 : vector<1x64x16xf32> to vector<64x16xf32>
    %13 = vector.shape_cast %10 : vector<64x16xf32> to vector<1x64x16xf32>
    tpu.vector_store %arg5[%c0_8, %c0_9, %c0_10], %13 {strides = array<i32>} : memref<1x64x16xf32, #tpu.memory_space<vmem>>, vector<1x64x16xf32>,
    return
  }
  func.func @transform_0(%arg0: i32, %arg1: i32) -> (i32, i32, i32, i32) {
    %c0_i32 = arith.constant 0 : i32
    %c0_i32_0 = arith.constant 0 : i32
    %c0_i32_1 = arith.constant 0 : i32
    return %arg0, %arg1, %c0_i32, %c0_i32_0 : i32, i32, i32, i32
  }
  func.func @transform_1(%arg0: i32, %arg1: i32) -> (i32, i32) {
    %c0_i32 = arith.constant 0 : i32
    %c0_i32_0 = arith.constant 0 : i32
    %c0_i32_1 = arith.constant 0 : i32
    return %c0_i32, %c0_i32_0 : i32, i32
  }
  func.func @transform_2(%arg0: i32, %arg1: i32) -> (i32, i32) {
    %c0_i32 = arith.constant 0 : i32
    %c0_i32_0 = arith.constant 0 : i32
    %c0_i32_1 = arith.constant 0 : i32
    return %c0_i32, %c0_i32_0 : i32, i32
  }
  func.func @transform_3(%arg0: i32, %arg1: i32) -> (i32, i32, i32) {
    %c0_i32 = arith.constant 0 : i32
    %c0_i32_0 = arith.constant 0 : i32
    return %arg0, %arg1, %c0_i32 : i32, i32, i32
  }
}

</mosaic_0001>

<llo_original>
// kernel: tpu_custom_call.1
$region0: #{tpu_custom_call.1}
  #allocation0 [shape = 'u32[]', space=smem, size = 0x4, offset = 0x4, fixed_abs, tag = 'smem constant byte address 0x4 - core index']
  #allocation1 [shape = 'u32[144,128]{1,0:T(1,128)}', space=vmem, size = 0x12000, scoped, tag = 'internal scratch']
  %s0 = inlined_call_operand.hbm [shape: f32[2,4,8,8], index: 0, kind: input, shape index: {}]
  %s1 = inlined_call_operand.hbm [shape: f32[8,16], index: 1, kind: input, shape index: {}]
  %s2 = inlined_call_operand.hbm [shape: f32[8,16], index: 2, kind: input, shape index: {}]
  %s3 = inlined_call_operand.vmem [shape: f32[2,64,16], index: 3, kind: output, shape index: {}]
  %s4 = sld [smem:[#allocation0]]
  $region57: #{tpu_custom_call.1} parent=0
    _
  %s6 = ssub.s32 1, %s4
  %s7 = scalar_select 0, %s6, %s4
  $region1: #{tpu_custom_call.1} parent=0
    #allocation2 [shape = 'u8[32768]{0}', space=vmem, size = 0x8000, scoped, tag = 'input window, operand 0']
    #allocation3 [shape = 's32[2]{0}', space=sflag, size = 0x8, scoped, tag = 'scoped memory for tpu_custom_call.1']
    #allocation4 [shape = 'u8[4096]{0}', space=vmem, size = 0x1000, scoped, tag = 'input window, operand 1, single buffered']
    #allocation5 [shape = 's32[1]{0}', space=sflag, size = 0x4, scoped, tag = 'scoped memory for tpu_custom_call.1']
    #allocation6 [shape = 'u8[4096]{0}', space=vmem, size = 0x1000, scoped, tag = 'input window, operand 2, single buffered']
    %8 = vsyncpa [#allocation3], 0
    %s9 = scalar_lea.sflag [#allocation3], 1
    %10 = vsyncpa %s9, 0
    %11 = vsyncpa [#allocation5], 0
    loop: start=0, step=1, limit=4
    $region2: #{tpu_custom_call.1} parent=1 // loop_pre_header
      _
    $region3: #{tpu_custom_call.1} parent=1 // loop_header
      %s13 = sphi 0, %s17
      %p14 = scmp.ge.s32.totalorder %s13, 4
      %s20 = sphi 0, %s32
      %s21 = sphi 0, %s28
      %s22 = sphi 0, %s20
      %s23 = sphi 0, %s21
      %s24 = sphi 0, %s22
      %s25 = sphi 0, %s23
      %s37 = sphi 0, %s39
      %s40 = sphi 0, %s37
      %s41 = sphi 0, %s40
      %s57 = sphi 0, %s41
      %s61 = sphi 0, %s61
      %s63 = sphi 0, %s61
      %s64 = sphi 0, %s63
      %s78 = sphi 0, %s64
      %s82 = sphi 0, %s82
      %s84 = sphi 0, %s82
      %s85 = sphi 0, %s84
      %s99 = sphi 0, %s85
      %s107 = sphi 0, %s109
      %s110 = sphi 0, %s107
      %s111 = sphi 0, %s110
      %s127 = sphi 0, %s111
    $region4: #{tpu_custom_call.1} parent=1 // loop_header_branch
      %16 = sbr.rel (%p14) target = $region8
    $region5: #{tpu_custom_call.1} parent=1 // loop_body
      %s18 = ssub.s32 %s13, 1
      %s19 = ssub.s32 %s13, 2
      %s26 = sadd.s32 1, %s21
      %p27 = scmp.ge.s32.totalorder %s26, 1
      %s28 = scalar_select %p27, 0, %s26
      %s29 = sadd.s32 1, %s20
      %s30 = scalar_select %p27, %s29, %s20
      %p31 = scmp.ge.s32.totalorder %s30, 2
      %s32 = scalar_select %p31, 0, %s30
      %s33 = ssub.s32 %s20, %s32
      %s34 = ssub.s32 %s21, %s28
      %s35 = sor.u32 %s33, %s34
      %p36 = scmp.eq.s32.totalorder %s35, 0
      %s38 = sadd.s32 %s37, 1
      %s39 = scalar_select %p36, %s37, %s38
      %p42 = pneg %p36
      %p43 = scmp.eq.s32.totalorder %s13, 1
      %p44 = por %p42, %p43
      %p45 = scmp.ne.s32.totalorder %s37, %s40
      %p46 = scmp.eq.s32.totalorder %s13, 0
      %p47 = por %p45, %p46
      %p48 = scmp.ne.s32.totalorder %s37, %s40
      %p49 = scmp.eq.s32.totalorder %s18, 1
      %p50 = por %p48, %p49
      %p51 = scmp.ne.s32.totalorder %s40, %s41
      %p52 = scmp.eq.s32.totalorder %s18, 0
      %p53 = por %p51, %p52
      %p54 = scmp.ne.s32.totalorder %s40, %s41
      %p55 = scmp.eq.s32.totalorder %s19, 1
      %p56 = por %p54, %p55
      %p58 = scmp.ne.s32.totalorder %s41, %s57
      %p59 = scmp.eq.s32.totalorder %s19, 0
      %p60 = por %p58, %p59
      %s62 = sadd.s32 %s61, 1
      %p65 = scmp.eq.s32.totalorder %s13, 1
      %p66 = scmp.ne.s32.totalorder %s61, %s63
      %p67 = scmp.eq.s32.totalorder %s13, 0
      %p68 = por %p66, %p67
      %p69 = scmp.ne.s32.totalorder %s61, %s63
      %p70 = scmp.eq.s32.totalorder %s18, 1
      %p71 = por %p69, %p70
      %p72 = scmp.ne.s32.totalorder %s63, %s64
      %p73 = scmp.eq.s32.totalorder %s18, 0
      %p74 = por %p72, %p73
      %p75 = scmp.ne.s32.totalorder %s63, %s64
      %p76 = scmp.eq.s32.totalorder %s19, 1
      %p77 = por %p75, %p76
      %p79 = scmp.ne.s32.totalorder %s64, %s78
      %p80 = scmp.eq.s32.totalorder %s19, 0
      %p81 = por %p79, %p80
      %s83 = sadd.s32 %s82, 1
      %p86 = scmp.eq.s32.totalorder %s13, 1
      %p87 = scmp.ne.s32.totalorder %s82, %s84
      %p88 = scmp.eq.s32.totalorder %s13, 0
      %p89 = por %p87, %p88
      %p90 = scmp.ne.s32.totalorder %s82, %s84
      %p91 = scmp.eq.s32.totalorder %s18, 1
      %p92 = por %p90, %p91
      %p93 = scmp.ne.s32.totalorder %s84, %s85
      %p94 = scmp.eq.s32.totalorder %s18, 0
      %p95 = por %p93, %p94
      %p96 = scmp.ne.s32.totalorder %s84, %s85
      %p97 = scmp.eq.s32.totalorder %s19, 1
      %p98 = por %p96, %p97
      %p100 = scmp.ne.s32.totalorder %s85, %s99
      %p101 = scmp.eq.s32.totalorder %s19, 0
      %p102 = por %p100, %p101
      %s103 = ssub.s32 %s20, %s32
      %s104 = ssub.s32 %s21, %s28
      %s105 = sor.u32 %s103, %s104
      %p106 = scmp.eq.s32.totalorder %s105, 0
      %s108 = sadd.s32 %s107, 1
      %s109 = scalar_select %p106, %s107, %s108
      %p112 = pneg %p106
      %p113 = scmp.eq.s32.totalorder %s13, 1
      %p114 = por %p112, %p113
      %p115 = scmp.ne.s32.totalorder %s107, %s110
      %p116 = scmp.eq.s32.totalorder %s13, 0
      %p117 = por %p115, %p116
      %p118 = scmp.ne.s32.totalorder %s107, %s110
      %p119 = scmp.eq.s32.totalorder %s18, 1
      %p120 = por %p118, %p119
      %p121 = scmp.ne.s32.totalorder %s110, %s111
      %p122 = scmp.eq.s32.totalorder %s18, 0
      %p123 = por %p121, %p122
      %p124 = scmp.ne.s32.totalorder %s110, %s111
      %p125 = scmp.eq.s32.totalorder %s19, 1
      %p126 = por %p124, %p125
      %p128 = scmp.ne.s32.totalorder %s111, %s127
      %p129 = scmp.eq.s32.totalorder %s19, 0
      %p130 = por %p128, %p129
      %p131 = scmp.le.s32.totalorder 1, %s13
      %p132 = scmp.lt.s32.totalorder %s13, 3
      %p133 = pnand %p131, %p132
      %p134 = pneg %p133
      // Predicated region
      $region9: #{tpu_custom_call.1} parent=5 // pred_check
        _
      $region10: #{tpu_custom_call.1} parent=5 // pred_check_branch
        %136 = sbr.rel (%p133) target = $region12
      $region11: #{tpu_custom_call.1} parent=5 // pred_region
        %s137 = ssub.s32 %s13, 1
        // Predicated region
        $region13: #{tpu_custom_call.1} parent=11 // pred_check
          %p138 = pneg %p74
        $region14: #{tpu_custom_call.1} parent=11 // pred_check_branch
          %140 = sbr.rel (%p138) target = $region16
        $region15: #{tpu_custom_call.1} parent=11 // pred_region
          %s142 = ssub.s32 128, 128
          %143 = vsyncadd [#allocation5], %s142
          %s145 = sshll.u32 [#allocation4], 4
          %s146 = int_to_ptr.vmem [resolvable:$true] %s145
          %148 = dma.hbm_to_vmem [thread:$0]  %s1, 128, %s146, [#allocation5]
        $region16: #{tpu_custom_call.1} parent=11 // pred_fallthru
          _
        // Predicated region
        $region17: #{tpu_custom_call.1} parent=11 // pred_check
          %p149 = pneg %p95
        $region18: #{tpu_custom_call.1} parent=11 // pred_check_branch
          %151 = sbr.rel (%p149) target = $region20
        $region19: #{tpu_custom_call.1} parent=11 // pred_region
          %s153 = ssub.s32 128, 128
          %154 = vsyncadd [#allocation5], %s153
          %s156 = sshll.u32 [#allocation6], 4
          %s157 = int_to_ptr.vmem [resolvable:$true] %s156
          %159 = dma.hbm_to_vmem [thread:$0]  %s2, 128, %s157, [#allocation5]
        $region20: #{tpu_custom_call.1} parent=11 // pred_fallthru
          _
      $region12: #{tpu_custom_call.1} parent=5 // pred_fallthru
        _
      %p160 = scmp.lt.s32.totalorder %s13, 2
      // Predicated region
      $region21: #{tpu_custom_call.1} parent=5 // pred_check
        %p161 = pneg %p160
      $region22: #{tpu_custom_call.1} parent=5 // pred_check_branch
        %163 = sbr.rel (%p161) target = $region24
      $region23: #{tpu_custom_call.1} parent=5 // pred_region
        // Predicated region
        $region25: #{tpu_custom_call.1} parent=23 // pred_check
          %p164 = pneg %p47
        $region26: #{tpu_custom_call.1} parent=23 // pred_check_branch
          %166 = sbr.rel (%p164) target = $region28
        $region27: #{tpu_custom_call.1} parent=23 // pred_region
          %s167 = sand.u32 %s37, 1
          %s168 = scalar_lea.sflag [#allocation3], %s167
          %s169 = sand.u32 %s37, 1
          %s170 = smul.addr %s169, 32
          %s171 = scalar_lea.vmem [#allocation2], %s170
          %s172 = smul.u32 4, %s21
          %s174 = ssub.s32 512, 512
          %175 = vsyncadd %s168, %s174
          %s176 = smul.addr %s20, 4
          %s177 = sadd.s32 %s172, %s176
          %s178 = smul.addr %s177, 128
          %s179 = scalar_lea.hbm %s0, %s178
          %s180 = sshll.u32 %s171, 4
          %s181 = int_to_ptr.vmem [resolvable:$true] %s180
          %186 = dma.hbm_to_vmem [thread:$0]  %s179, 512, %s181, %s168, 128, 128, 8
        $region28: #{tpu_custom_call.1} parent=23 // pred_fallthru
          _
      $region24: #{tpu_custom_call.1} parent=5 // pred_fallthru
        _
      %p187 = scmp.le.s32.totalorder 1, %s13
      %p188 = scmp.lt.s32.totalorder %s13, 3
      %p189 = pnand %p187, %p188
      %p190 = pneg %p189
      // Predicated region
      $region29: #{tpu_custom_call.1} parent=5 // pred_check
        _
      $region30: #{tpu_custom_call.1} parent=5 // pred_check_branch
        %192 = sbr.rel (%p189) target = $region32
      $region31: #{tpu_custom_call.1} parent=5 // pred_region
        %s193 = ssub.s32 %s13, 1
        %s194 = sand.u32 %s40, 1
        %s195 = scalar_lea.sflag [#allocation3], %s194
        %s196 = sand.u32 %s40, 1
        %s197 = smul.addr %s196, 32
        %s198 = scalar_lea.vmem [#allocation2], %s197
        // Predicated region
        $region33: #{tpu_custom_call.1} parent=31 // pred_check
          %p199 = pneg %p53
        $region34: #{tpu_custom_call.1} parent=31 // pred_check_branch
          %201 = sbr.rel (%p199) target = $region36
        $region35: #{tpu_custom_call.1} parent=31 // pred_region
          %202 = dma.done %s195, 512
        $region36: #{tpu_custom_call.1} parent=31 // pred_fallthru
          _
        // Predicated region
        $region37: #{tpu_custom_call.1} parent=31 // pred_check
          %p203 = pneg %p74
        $region38: #{tpu_custom_call.1} parent=31 // pred_check_branch
          %205 = sbr.rel (%p203) target = $region40
        $region39: #{tpu_custom_call.1} parent=31 // pred_region
          %206 = dma.done [#allocation5], 128
        $region40: #{tpu_custom_call.1} parent=31 // pred_fallthru
          _
        // Predicated region
        $region41: #{tpu_custom_call.1} parent=31 // pred_check
          %p207 = pneg %p95
        $region42: #{tpu_custom_call.1} parent=31 // pred_check_branch
          %209 = sbr.rel (%p207) target = $region44
        $region43: #{tpu_custom_call.1} parent=31 // pred_region
          %210 = dma.done [#allocation5], 128
        $region44: #{tpu_custom_call.1} parent=31 // pred_fallthru
          _
        %s211 = sand.u32 %s40, 1
        %s212 = scalar_lea.sflag [#allocation3], %s211
        %s213 = sand.u32 %s40, 1
        %s214 = smul.addr %s213, 32
        %s215 = scalar_lea.vmem [#allocation2], %s214
        %p216 = pneg %p53
        %p217 = pneg %p50
        %p218 = pneg %p74
        %p219 = pneg %p71
        %p220 = pneg %p95
        %p221 = pneg %p92
        %p222 = pneg %p123
        %p223 = pneg %p120
        %s224 = smul.u32 8, %s23
        %p225 = scmp.lt.s32.totalorder %s22, 1
        %s226 = scalar_select %p225, %s22, 1
        %p227 = scmp.lt.s32.totalorder %s224, 7
        %s228 = scalar_select %p227, %s224, 7
        %s229 = smul.addr %s226, 8
        %s230 = sadd.s32 %s228, %s229
        %s231 = smul.addr %s230, 8
        %s232 = scalar_lea.vmem %s3, %s231
        %s233 = smul.u32 4, %s23
        %s234 = smul.u32 8, %s23
        %p235 = scmp.lt.s32.totalorder %s22, 1
        %s236 = scalar_select %p235, %s22, 1
        %p237 = scmp.lt.s32.totalorder %s234, 7
        %s238 = scalar_select %p237, %s234, 7
        %s239 = smul.addr %s236, 8
        %s240 = sadd.s32 %s238, %s239
        %s241 = smul.addr %s240, 8
        %s242 = scalar_lea.vmem %s3, %s241
        %s243 = smul.u32 8, %s23
        %v244 = vld [vmem:[%s198] sm:$0xff]
        %v245 = vld [vmem:[%s198 + $0x8] sm:$0xff]
        %v246 = vld [vmem:[%s198 + $0x10] sm:$0xff]
        %v247 = vld [vmem:[%s198 + $0x18] sm:$0xff]
        %248 = vxpose.xlu0.b32.start [1/16] %v244, 128
        %249 = vxpose.xlu0.b32.cont [2/16] 0.0, 128
        %250 = vxpose.xlu0.b32.cont [3/16] 0.0, 128
        %251 = vxpose.xlu0.b32.cont [4/16] 0.0, 128
        %252 = vxpose.xlu0.b32.cont [5/16] 0.0, 128
        %253 = vxpose.xlu0.b32.cont [6/16] 0.0, 128
        %254 = vxpose.xlu0.b32.cont [7/16] 0.0, 128
        %255 = vxpose.xlu0.b32.cont [8/16] 0.0, 128
        %256 = vxpose.xlu0.b32.cont [9/16] 0.0, 128
        %257 = vxpose.xlu0.b32.cont [10/16] 0.0, 128
        %258 = vxpose.xlu0.b32.cont [11/16] 0.0, 128
        %259 = vxpose.xlu0.b32.cont [12/16] 0.0, 128
        %260 = vxpose.xlu0.b32.cont [13/16] 0.0, 128
        %261 = vxpose.xlu0.b32.cont [14/16] 0.0, 128
        %262 = vxpose.xlu0.b32.cont [15/16] 0.0, 128
        %263 = vxpose.xlu0.b32.end [16/16] 0.0, 128
        %v264 = vpop.trf.xlu0
        %v265 = vpop.trf.xlu0
        %v266 = vpop.trf.xlu0
        %v267 = vpop.trf.xlu0
        %v268 = vpop.trf.xlu0
        %v269 = vpop.trf.xlu0
        %v270 = vpop.trf.xlu0
        %v271 = vpop.trf.xlu0
        %v272 = vpop.trf.xlu0
        %v273 = vpop.trf.xlu0
        %v274 = vpop.trf.xlu0
        %v275 = vpop.trf.xlu0
        %v276 = vpop.trf.xlu0
        %v277 = vpop.trf.xlu0
        %v278 = vpop.trf.xlu0
        %v279 = vpop.trf.xlu0
        %280 = vxpose.xlu0.b32.start [1/16] %v245, 128
        %281 = vxpose.xlu0.b32.cont [2/16] 0.0, 128
        %282 = vxpose.xlu0.b32.cont [3/16] 0.0, 128
        %283 = vxpose.xlu0.b32.cont [4/16] 0.0, 128
        %284 = vxpose.xlu0.b32.cont [5/16] 0.0, 128
        %285 = vxpose.xlu0.b32.cont [6/16] 0.0, 128
        %286 = vxpose.xlu0.b32.cont [7/16] 0.0, 128
        %287 = vxpose.xlu0.b32.cont [8/16] 0.0, 128
        %288 = vxpose.xlu0.b32.cont [9/16] 0.0, 128
        %289 = vxpose.xlu0.b32.cont [10/16] 0.0, 128
        %290 = vxpose.xlu0.b32.cont [11/16] 0.0, 128
        %291 = vxpose.xlu0.b32.cont [12/16] 0.0, 128
        %292 = vxpose.xlu0.b32.cont [13/16] 0.0, 128
        %293 = vxpose.xlu0.b32.cont [14/16] 0.0, 128
        %294 = vxpose.xlu0.b32.cont [15/16] 0.0, 128
        %295 = vxpose.xlu0.b32.end [16/16] 0.0, 128
        %v296 = vpop.trf.xlu0
        %v297 = vpop.trf.xlu0
        %v298 = vpop.trf.xlu0
        %v299 = vpop.trf.xlu0
        %v300 = vpop.trf.xlu0
        %v301 = vpop.trf.xlu0
        %v302 = vpop.trf.xlu0
        %v303 = vpop.trf.xlu0
        %v304 = vpop.trf.xlu0
        %v305 = vpop.trf.xlu0
        %v306 = vpop.trf.xlu0
        %v307 = vpop.trf.xlu0
        %v308 = vpop.trf.xlu0
        %v309 = vpop.trf.xlu0
        %v310 = vpop.trf.xlu0
        %v311 = vpop.trf.xlu0
        %312 = vxpose.xlu0.b32.start [1/16] %v246, 128
        %313 = vxpose.xlu0.b32.cont [2/16] 0.0, 128
        %314 = vxpose.xlu0.b32.cont [3/16] 0.0, 128
        %315 = vxpose.xlu0.b32.cont [4/16] 0.0, 128
        %316 = vxpose.xlu0.b32.cont [5/16] 0.0, 128
        %317 = vxpose.xlu0.b32.cont [6/16] 0.0, 128
        %318 = vxpose.xlu0.b32.cont [7/16] 0.0, 128
        %319 = vxpose.xlu0.b32.cont [8/16] 0.0, 128
        %320 = vxpose.xlu0.b32.cont [9/16] 0.0, 128
        %321 = vxpose.xlu0.b32.cont [10/16] 0.0, 128
        %322 = vxpose.xlu0.b32.cont [11/16] 0.0, 128
        %323 = vxpose.xlu0.b32.cont [12/16] 0.0, 128
        %324 = vxpose.xlu0.b32.cont [13/16] 0.0, 128
        %325 = vxpose.xlu0.b32.cont [14/16] 0.0, 128
        %326 = vxpose.xlu0.b32.cont [15/16] 0.0, 128
        %327 = vxpose.xlu0.b32.end [16/16] 0.0, 128
        %v328 = vpop.trf.xlu0
        %v329 = vpop.trf.xlu0
        %v330 = vpop.trf.xlu0
        %v331 = vpop.trf.xlu0
        %v332 = vpop.trf.xlu0
        %v333 = vpop.trf.xlu0
        %v334 = vpop.trf.xlu0
        %v335 = vpop.trf.xlu0
        %v336 = vpop.trf.xlu0
        %v337 = vpop.trf.xlu0
        %v338 = vpop.trf.xlu0
        %v339 = vpop.trf.xlu0
        %v340 = vpop.trf.xlu0
        %v341 = vpop.trf.xlu0
        %v342 = vpop.trf.xlu0
        %v343 = vpop.trf.xlu0
        %344 = vxpose.xlu0.b32.start [1/16] %v247, 128
        %345 = vxpose.xlu0.b32.cont [2/16] 0.0, 128
        %346 = vxpose.xlu0.b32.cont [3/16] 0.0, 128
        %347 = vxpose.xlu0.b32.cont [4/16] 0.0, 128
        %348 = vxpose.xlu0.b32.cont [5/16] 0.0, 128
        %349 = vxpose.xlu0.b32.cont [6/16] 0.0, 128
        %350 = vxpose.xlu0.b32.cont [7/16] 0.0, 128
        %351 = vxpose.xlu0.b32.cont [8/16] 0.0, 128
        %352 = vxpose.xlu0.b32.cont [9/16] 0.0, 128
        %353 = vxpose.xlu0.b32.cont [10/16] 0.0, 128
        %354 = vxpose.xlu0.b32.cont [11/16] 0.0, 128
        %355 = vxpose.xlu0.b32.cont [12/16] 0.0, 128
        %356 = vxpose.xlu0.b32.cont [13/16] 0.0, 128
        %357 = vxpose.xlu0.b32.cont [14/16] 0.0, 128
        %358 = vxpose.xlu0.b32.cont [15/16] 0.0, 128
        %359 = vxpose.xlu0.b32.end [16/16] 0.0, 128
        %v360 = vpop.trf.xlu0
        %v361 = vpop.trf.xlu0
        %v362 = vpop.trf.xlu0
        %v363 = vpop.trf.xlu0
        %v364 = vpop.trf.xlu0
        %v365 = vpop.trf.xlu0
        %v366 = vpop.trf.xlu0
        %v367 = vpop.trf.xlu0
        %v368 = vpop.trf.xlu0
        %v369 = vpop.trf.xlu0
        %v370 = vpop.trf.xlu0
        %v371 = vpop.trf.xlu0
        %v372 = vpop.trf.xlu0
        %v373 = vpop.trf.xlu0
        %v374 = vpop.trf.xlu0
        %v375 = vpop.trf.xlu0
        %v376 = vld [vmem:[#allocation4] sm:$0xff]
        %vm377 = vcmask 64512
        %v379 = vsel %vm377, %v264, 0
        %v382 = vsel %vm377, %v296, 0
        %v385 = vsel %vm377, %v328, 0
        %v388 = vsel %vm377, %v360, 0
        %390 = vmatprep.subr.mxu0 0.0
        %391 = vmatpush1.msra.mxu0 %v376
        %392 = vmatprep.subr.mxu0 0.0
        %393 = vmatpush1.msra.mxu0 0.0
        %394 = vmatprep.subr.mxu0 0.0
        %395 = vmatpush1.msra.mxu0 0.0
        %396 = vmatprep.subr.mxu0 0.0
        %397 = vmatpush1.msra.mxu0 0.0
        %398 = vmatprep.subr.mxu0 0.0
        %399 = vmatpush1.msra.mxu0 0.0
        %400 = vmatprep.subr.mxu0 0.0
        %401 = vmatpush1.msra.mxu0 0.0
        %402 = vmatprep.subr.mxu0 0.0
        %403 = vmatpush1.msra.mxu0 0.0
        %404 = vmatprep.subr.mxu0 0.0
        %405 = vmatpush1.msra.mxu0 0.0
        %406 = vmatprep.subr.mxu0 0.0
        %407 = vmatpush1.msra.mxu0 0.0
        %408 = vmatprep.subr.mxu0 0.0
        %409 = vmatpush1.msra.mxu0 0.0
        %410 = vmatprep.subr.mxu0 0.0
        %411 = vmatpush1.msra.mxu0 0.0
        %412 = vmatprep.subr.mxu0 0.0
        %413 = vmatpush1.msra.mxu0 0.0
        %414 = vmatprep.subr.mxu0 0.0
        %415 = vmatpush1.msra.mxu0 0.0
        %416 = vmatprep.subr.mxu0 0.0
        %417 = vmatpush1.msra.mxu0 0.0
        %418 = vmatprep.subr.mxu0 0.0
        %419 = vmatpush1.msra.mxu0 0.0
        %420 = vmatprep.subr.mxu0 0.0
        %421 = vmatpush1.msra.mxu0 0.0
        %422 = vmatprep.subr.mxu0 0.0
        %423 = vmatpush1.msra.mxu0 0.0
        %424 = vmatprep.subr.mxu0 0.0
        %425 = vmatpush1.msra.mxu0 0.0
        %426 = vmatprep.subr.mxu0 0.0
        %427 = vmatpush1.msra.mxu0 0.0
        %428 = vmatprep.subr.mxu0 0.0
        %429 = vmatpush1.msra.mxu0 0.0
        %430 = vmatprep.subr.mxu0 0.0
        %431 = vmatpush1.msra.mxu0 0.0
        %432 = vmatprep.subr.mxu0 0.0
        %433 = vmatpush1.msra.mxu0 0.0
        %434 = vmatprep.subr.mxu0 0.0
        %435 = vmatpush1.msra.mxu0 0.0
        %436 = vmatprep.subr.mxu0 0.0
        %437 = vmatpush1.msra.mxu0 0.0
        %438 = vmatprep.subr.mxu0 0.0
        %439 = vmatpush1.msra.mxu0 0.0
        %440 = vmatprep.subr.mxu0 0.0
        %441 = vmatpush1.msra.mxu0 0.0
        %442 = vmatprep.subr.mxu0 0.0
        %443 = vmatpush1.msra.mxu0 0.0
        %444 = vmatprep.subr.mxu0 0.0
        %445 = vmatpush1.msra.mxu0 0.0
        %446 = vmatprep.subr.mxu0 0.0
        %447 = vmatpush1.msra.mxu0 0.0
        %448 = vmatprep.subr.mxu0 0.0
        %449 = vmatpush1.msra.mxu0 0.0
        %450 = vmatprep.subr.mxu0 0.0
        %451 = vmatpush1.msra.mxu0 0.0
        %452 = vmatprep.subr.mxu0 0.0
        %453 = vmatpush1.msra.mxu0 0.0
        %454 = vmatprep.mubr.f32.mxu0 0.0
        %455 = vmatmul.mubr.f32.gmra.mrb[0].mxu0 %v379
        %v456 = vpop.f32.mrb[0].mxu0
        %v457 = vadd.f32 0.0, %v456
        %v458 = vpop.f32.mrb[0].mxu0
        %459 = vmatprep.mubr.f32.mxu0 0.0
        %460 = vmatmul.mubr.f32.gmra.mrb[0].mxu0 %v382
        %v461 = vpop.f32.mrb[0].mxu0
        %v462 = vadd.f32 0.0, %v461
        %v463 = vpop.f32.mrb[0].mxu0
        %464 = vmatprep.mubr.f32.mxu0 0.0
        %465 = vmatmul.mubr.f32.gmra.mrb[0].mxu0 %v385
        %v466 = vpop.f32.mrb[0].mxu0
        %v467 = vadd.f32 0.0, %v466
        %v468 = vpop.f32.mrb[0].mxu0
        %469 = vmatprep.mubr.f32.mxu0 0.0
        %470 = vmatmul.mubr.f32.gmra.mrb[0].mxu0 %v388
        %v471 = vpop.f32.mrb[0].mxu0
        %v472 = vadd.f32 0.0, %v471
        %v473 = vpop.f32.mrb[0].mxu0
        %474 = vdwg.mxu0
        %475 = vxpose.xlu0.b32.start [1/16] %v457, 128
        %476 = vxpose.xlu0.b32.cont [2/16] 0.0, 128
        %477 = vxpose.xlu0.b32.cont [3/16] 0.0, 128
        %478 = vxpose.xlu0.b32.cont [4/16] 0.0, 128
        %479 = vxpose.xlu0.b32.cont [5/16] 0.0, 128
        %480 = vxpose.xlu0.b32.cont [6/16] 0.0, 128
        %481 = vxpose.xlu0.b32.cont [7/16] 0.0, 128
        %482 = vxpose.xlu0.b32.cont [8/16] 0.0, 128
        %483 = vxpose.xlu0.b32.cont [9/16] 0.0, 128
        %484 = vxpose.xlu0.b32.cont [10/16] 0.0, 128
        %485 = vxpose.xlu0.b32.cont [11/16] 0.0, 128
        %486 = vxpose.xlu0.b32.cont [12/16] 0.0, 128
        %487 = vxpose.xlu0.b32.cont [13/16] 0.0, 128
        %488 = vxpose.xlu0.b32.cont [14/16] 0.0, 128
        %489 = vxpose.xlu0.b32.cont [15/16] 0.0, 128
        %490 = vxpose.xlu0.b32.end [16/16] 0.0, 128
        %v491 = vpop.trf.xlu0
        %v492 = vpop.trf.xlu0
        %v493 = vpop.trf.xlu0
        %v494 = vpop.trf.xlu0
        %v495 = vpop.trf.xlu0
        %v496 = vpop.trf.xlu0
        %v497 = vpop.trf.xlu0
        %v498 = vpop.trf.xlu0
        %v499 = vpop.trf.xlu0
        %v500 = vpop.trf.xlu0
        %v501 = vpop.trf.xlu0
        %v502 = vpop.trf.xlu0
        %v503 = vpop.trf.xlu0
        %v504 = vpop.trf.xlu0
        %v505 = vpop.trf.xlu0
        %v506 = vpop.trf.xlu0
        %507 = vxpose.xlu0.b32.start [1/16] %v462, 128
        %508 = vxpose.xlu0.b32.cont [2/16] 0.0, 128
        %509 = vxpose.xlu0.b32.cont [3/16] 0.0, 128
        %510 = vxpose.xlu0.b32.cont [4/16] 0.0, 128
        %511 = vxpose.xlu0.b32.cont [5/16] 0.0, 128
        %512 = vxpose.xlu0.b32.cont [6/16] 0.0, 128
        %513 = vxpose.xlu0.b32.cont [7/16] 0.0, 128
        %514 = vxpose.xlu0.b32.cont [8/16] 0.0, 128
        %515 = vxpose.xlu0.b32.cont [9/16] 0.0, 128
        %516 = vxpose.xlu0.b32.cont [10/16] 0.0, 128
        %517 = vxpose.xlu0.b32.cont [11/16] 0.0, 128
        %518 = vxpose.xlu0.b32.cont [12/16] 0.0, 128
        %519 = vxpose.xlu0.b32.cont [13/16] 0.0, 128
        %520 = vxpose.xlu0.b32.cont [14/16] 0.0, 128
        %521 = vxpose.xlu0.b32.cont [15/16] 0.0, 128
        %522 = vxpose.xlu0.b32.end [16/16] 0.0, 128
        %v523 = vpop.trf.xlu0
        %v524 = vpop.trf.xlu0
        %v525 = vpop.trf.xlu0
        %v526 = vpop.trf.xlu0
        %v527 = vpop.trf.xlu0
        %v528 = vpop.trf.xlu0
        %v529 = vpop.trf.xlu0
        %v530 = vpop.trf.xlu0
        %v531 = vpop.trf.xlu0
        %v532 = vpop.trf.xlu0
        %v533 = vpop.trf.xlu0
        %v534 = vpop.trf.xlu0
        %v535 = vpop.trf.xlu0
        %v536 = vpop.trf.xlu0
        %v537 = vpop.trf.xlu0
        %v538 = vpop.trf.xlu0
        %539 = vxpose.xlu0.b32.start [1/16] %v467, 128
        %540 = vxpose.xlu0.b32.cont [2/16] 0.0, 128
        %541 = vxpose.xlu0.b32.cont [3/16] 0.0, 128
        %542 = vxpose.xlu0.b32.cont [4/16] 0.0, 128
        %543 = vxpose.xlu0.b32.cont [5/16] 0.0, 128
        %544 = vxpose.xlu0.b32.cont [6/16] 0.0, 128
        %545 = vxpose.xlu0.b32.cont [7/16] 0.0, 128
        %546 = vxpose.xlu0.b32.cont [8/16] 0.0, 128
        %547 = vxpose.xlu0.b32.cont [9/16] 0.0, 128
        %548 = vxpose.xlu0.b32.cont [10/16] 0.0, 128
        %549 = vxpose.xlu0.b32.cont [11/16] 0.0, 128
        %550 = vxpose.xlu0.b32.cont [12/16] 0.0, 128
        %551 = vxpose.xlu0.b32.cont [13/16] 0.0, 128
        %552 = vxpose.xlu0.b32.cont [14/16] 0.0, 128
        %553 = vxpose.xlu0.b32.cont [15/16] 0.0, 128
        %554 = vxpose.xlu0.b32.end [16/16] 0.0, 128
        %v555 = vpop.trf.xlu0
        %v556 = vpop.trf.xlu0
        %v557 = vpop.trf.xlu0
        %v558 = vpop.trf.xlu0
        %v559 = vpop.trf.xlu0
        %v560 = vpop.trf.xlu0
        %v561 = vpop.trf.xlu0
        %v562 = vpop.trf.xlu0
        %v563 = vpop.trf.xlu0
        %v564 = vpop.trf.xlu0
        %v565 = vpop.trf.xlu0
        %v566 = vpop.trf.xlu0
        %v567 = vpop.trf.xlu0
        %v568 = vpop.trf.xlu0
        %v569 = vpop.trf.xlu0
        %v570 = vpop.trf.xlu0
        %571 = vxpose.xlu0.b32.start [1/16] %v472, 128
        %572 = vxpose.xlu0.b32.cont [2/16] 0.0, 128
        %573 = vxpose.xlu0.b32.cont [3/16] 0.0, 128
        %574 = vxpose.xlu0.b32.cont [4/16] 0.0, 128
        %575 = vxpose.xlu0.b32.cont [5/16] 0.0, 128
        %576 = vxpose.xlu0.b32.cont [6/16] 0.0, 128
        %577 = vxpose.xlu0.b32.cont [7/16] 0.0, 128
        %578 = vxpose.xlu0.b32.cont [8/16] 0.0, 128
        %579 = vxpose.xlu0.b32.cont [9/16] 0.0, 128
        %580 = vxpose.xlu0.b32.cont [10/16] 0.0, 128
        %581 = vxpose.xlu0.b32.cont [11/16] 0.0, 128
        %582 = vxpose.xlu0.b32.cont [12/16] 0.0, 128
        %583 = vxpose.xlu0.b32.cont [13/16] 0.0, 128
        %584 = vxpose.xlu0.b32.cont [14/16] 0.0, 128
        %585 = vxpose.xlu0.b32.cont [15/16] 0.0, 128
        %586 = vxpose.xlu0.b32.end [16/16] 0.0, 128
        %v587 = vpop.trf.xlu0
        %v588 = vpop.trf.xlu0
        %v589 = vpop.trf.xlu0
        %v590 = vpop.trf.xlu0
        %v591 = vpop.trf.xlu0
        %v592 = vpop.trf.xlu0
        %v593 = vpop.trf.xlu0
        %v594 = vpop.trf.xlu0
        %v595 = vpop.trf.xlu0
        %v596 = vpop.trf.xlu0
        %v597 = vpop.trf.xlu0
        %v598 = vpop.trf.xlu0
        %v599 = vpop.trf.xlu0
        %v600 = vpop.trf.xlu0
        %v601 = vpop.trf.xlu0
        %v602 = vpop.trf.xlu0
        %v603 = vld [vmem:[#allocation6] sm:$0xff]
        %v605 = vsel %vm377, %v491, 0
        %v608 = vsel %vm377, %v492, 0
        %v611 = vsel %vm377, %v523, 0
        %v614 = vsel %vm377, %v524, 0
        %v617 = vsel %vm377, %v555, 0
        %v620 = vsel %vm377, %v556, 0
        %v623 = vsel %vm377, %v587, 0
        %v626 = vsel %vm377, %v588, 0
        %628 = vmatprep.subr.mxu0 0.0
        %629 = vmatpush1.msra.mxu0 %v603
        %630 = vmatprep.subr.mxu0 0.0
        %631 = vmatpush1.msra.mxu0 0.0
        %632 = vmatprep.subr.mxu0 0.0
        %633 = vmatpush1.msra.mxu0 0.0
        %634 = vmatprep.subr.mxu0 0.0
        %635 = vmatpush1.msra.mxu0 0.0
        %636 = vmatprep.subr.mxu0 0.0
        %637 = vmatpush1.msra.mxu0 0.0
        %638 = vmatprep.subr.mxu0 0.0
        %639 = vmatpush1.msra.mxu0 0.0
        %640 = vmatprep.subr.mxu0 0.0
        %641 = vmatpush1.msra.mxu0 0.0
        %642 = vmatprep.subr.mxu0 0.0
        %643 = vmatpush1.msra.mxu0 0.0
        %644 = vmatprep.subr.mxu0 0.0
        %645 = vmatpush1.msra.mxu0 0.0
        %646 = vmatprep.subr.mxu0 0.0
        %647 = vmatpush1.msra.mxu0 0.0
        %648 = vmatprep.subr.mxu0 0.0
        %649 = vmatpush1.msra.mxu0 0.0
        %650 = vmatprep.subr.mxu0 0.0
        %651 = vmatpush1.msra.mxu0 0.0
        %652 = vmatprep.subr.mxu0 0.0
        %653 = vmatpush1.msra.mxu0 0.0
        %654 = vmatprep.subr.mxu0 0.0
        %655 = vmatpush1.msra.mxu0 0.0
        %656 = vmatprep.subr.mxu0 0.0
        %657 = vmatpush1.msra.mxu0 0.0
        %658 = vmatprep.subr.mxu0 0.0
        %659 = vmatpush1.msra.mxu0 0.0
        %660 = vmatprep.subr.mxu0 0.0
        %661 = vmatpush1.msra.mxu0 0.0
        %662 = vmatprep.subr.mxu0 0.0
        %663 = vmatpush1.msra.mxu0 0.0
        %664 = vmatprep.subr.mxu0 0.0
        %665 = vmatpush1.msra.mxu0 0.0
        %666 = vmatprep.subr.mxu0 0.0
        %667 = vmatpush1.msra.mxu0 0.0
        %668 = vmatprep.subr.mxu0 0.0
        %669 = vmatpush1.msra.mxu0 0.0
        %670 = vmatprep.subr.mxu0 0.0
        %671 = vmatpush1.msra.mxu0 0.0
        %672 = vmatprep.subr.mxu0 0.0
        %673 = vmatpush1.msra.mxu0 0.0
        %674 = vmatprep.subr.mxu0 0.0
        %675 = vmatpush1.msra.mxu0 0.0
        %676 = vmatprep.subr.mxu0 0.0
        %677 = vmatpush1.msra.mxu0 0.0
        %678 = vmatprep.subr.mxu0 0.0
        %679 = vmatpush1.msra.mxu0 0.0
        %680 = vmatprep.subr.mxu0 0.0
        %681 = vmatpush1.msra.mxu0 0.0
        %682 = vmatprep.subr.mxu0 0.0
        %683 = vmatpush1.msra.mxu0 0.0
        %684 = vmatprep.subr.mxu0 0.0
        %685 = vmatpush1.msra.mxu0 0.0
        %686 = vmatprep.subr.mxu0 0.0
        %687 = vmatpush1.msra.mxu0 0.0
        %688 = vmatprep.subr.mxu0 0.0
        %689 = vmatpush1.msra.mxu0 0.0
        %690 = vmatprep.subr.mxu0 0.0
        %691 = vmatpush1.msra.mxu0 0.0
        %692 = vmatprep.mubr.f32.mxu0 0.0
        %693 = vmatmul.mubr.f32.gmra.mrb[0].mxu0 %v605
        %v694 = vpop.f32.mrb[0].mxu0
        %v695 = vadd.f32 0.0, %v694
        %v696 = vpop.f32.mrb[0].mxu0
        %697 = vmatprep.mubr.f32.mxu0 0.0
        %698 = vmatmul.mubr.f32.gmra.mrb[0].mxu0 %v608
        %v699 = vpop.f32.mrb[0].mxu0
        %v700 = vadd.f32 0.0, %v699
        %v701 = vpop.f32.mrb[0].mxu0
        %702 = vmatprep.mubr.f32.mxu0 0.0
        %703 = vmatmul.mubr.f32.gmra.mrb[0].mxu0 %v611
        %v704 = vpop.f32.mrb[0].mxu0
        %v705 = vadd.f32 0.0, %v704
        %v706 = vpop.f32.mrb[0].mxu0
        %707 = vmatprep.mubr.f32.mxu0 0.0
        %708 = vmatmul.mubr.f32.gmra.mrb[0].mxu0 %v614
        %v709 = vpop.f32.mrb[0].mxu0
        %v710 = vadd.f32 0.0, %v709
        %v711 = vpop.f32.mrb[0].mxu0
        %712 = vmatprep.mubr.f32.mxu0 0.0
        %713 = vmatmul.mubr.f32.gmra.mrb[0].mxu0 %v617
        %v714 = vpop.f32.mrb[0].mxu0
        %v715 = vadd.f32 0.0, %v714
        %v716 = vpop.f32.mrb[0].mxu0
        %717 = vmatprep.mubr.f32.mxu0 0.0
        %718 = vmatmul.mubr.f32.gmra.mrb[0].mxu0 %v620
        %v719 = vpop.f32.mrb[0].mxu0
        %v720 = vadd.f32 0.0, %v719
        %v721 = vpop.f32.mrb[0].mxu0
        %722 = vmatprep.mubr.f32.mxu0 0.0
        %723 = vmatmul.mubr.f32.gmra.mrb[0].mxu0 %v623
        %v724 = vpop.f32.mrb[0].mxu0
        %v725 = vadd.f32 0.0, %v724
        %v726 = vpop.f32.mrb[0].mxu0
        %727 = vmatprep.mubr.f32.mxu0 0.0
        %728 = vmatmul.mubr.f32.gmra.mrb[0].mxu0 %v626
        %v729 = vpop.f32.mrb[0].mxu0
        %v730 = vadd.f32 0.0, %v729
        %v731 = vpop.f32.mrb[0].mxu0
        %732 = vdwg.mxu0
        %vm733 = vcmask 130048
        %734 = vst.msk [vmem:[%s242] sm:$0xff] %vm733, %v695
        %735 = vst.msk [vmem:[%s242 + $0x8] sm:$0xff] %vm733, %v700
        %736 = vst.msk [vmem:[%s242 + $0x10] sm:$0xff] %vm733, %v705
        %737 = vst.msk [vmem:[%s242 + $0x18] sm:$0xff] %vm733, %v710
        %738 = vst.msk [vmem:[%s242 + $0x20] sm:$0xff] %vm733, %v715
        %739 = vst.msk [vmem:[%s242 + $0x28] sm:$0xff] %vm733, %v720
        %740 = vst.msk [vmem:[%s242 + $0x30] sm:$0xff] %vm733, %v725
        %741 = vst.msk [vmem:[%s242 + $0x38] sm:$0xff] %vm733, %v730
        %s742 = smul.u32 8, %s23
        %p743 = scmp.lt.s32.totalorder %s22, 1
        %s744 = scalar_select %p743, %s22, 1
        %p745 = scmp.lt.s32.totalorder %s742, 7
        %s746 = scalar_select %p745, %s742, 7
        %s747 = smul.addr %s744, 8
        %s748 = sadd.s32 %s746, %s747
        %s749 = smul.addr %s748, 8
        %s750 = scalar_lea.vmem %s3, %s749
        // Predicated region
        $region45: #{tpu_custom_call.1} parent=31 // pred_check
          %p751 = pneg %p120
        $region46: #{tpu_custom_call.1} parent=31 // pred_check_branch
          %753 = sbr.rel (%p751) target = $region48
        $region47: #{tpu_custom_call.1} parent=31 // pred_region
          %s754 = smul.u32 8, %s23
        $region48: #{tpu_custom_call.1} parent=31 // pred_fallthru
          _
      $region32: #{tpu_custom_call.1} parent=5 // pred_fallthru
        _
      %p755 = scmp.le.s32.totalorder 2, %s13
      // Predicated region
      $region49: #{tpu_custom_call.1} parent=5 // pred_check
        %p756 = pneg %p755
      $region50: #{tpu_custom_call.1} parent=5 // pred_check_branch
        %758 = sbr.rel (%p756) target = $region52
      $region51: #{tpu_custom_call.1} parent=5 // pred_region
        %s759 = ssub.s32 %s13, 2
        // Predicated region
        $region53: #{tpu_custom_call.1} parent=51 // pred_check
          %p760 = pneg %p126
        $region54: #{tpu_custom_call.1} parent=51 // pred_check_branch
          %762 = sbr.rel (%p760) target = $region56
        $region55: #{tpu_custom_call.1} parent=51 // pred_region
          %s763 = smul.u32 8, %s25
          %p764 = scmp.lt.s32.totalorder %s24, 1
          %s765 = scalar_select %p764, %s24, 1
          %p766 = scmp.lt.s32.totalorder %s763, 7
          %s767 = scalar_select %p766, %s763, 7
          %s768 = smul.addr %s765, 8
          %s769 = sadd.s32 %s767, %s768
          %s770 = smul.addr %s769, 8
          %s771 = scalar_lea.vmem %s3, %s770
        $region56: #{tpu_custom_call.1} parent=51 // pred_fallthru
          _
      $region52: #{tpu_custom_call.1} parent=5 // pred_fallthru
        _
    $region6: #{tpu_custom_call.1} parent=1 // loop_footer
      %s17 = sadd.s32 1, %s13
    $region7: #{tpu_custom_call.1} parent=1 // loop_footer_branch
      %12 = sbr.rel target = $region3
    $region8: #{tpu_custom_call.1} parent=1 // loop_exit
      _
    %772 = vsyncpa [#allocation3], 1
    %s773 = scalar_lea.sflag [#allocation3], 1
    %774 = vsyncpa %s773, 1
    %775 = vsyncpa [#allocation5], 1

</llo_original>
